<compile_context>
chip_gen: v7x
topology: tpu7x:2x2x1
jax: 0.10.0
libtpu: 0.0.40
codegen_flags: <defaults>
</compile_context>

<pallas_src>
import functools

import jax
import jax.numpy as jnp
from jax import lax
from jax.experimental import pallas as pl
from jax.experimental.pallas import tpu as pltpu

IMAGENET_MEAN = (0.485, 0.456, 0.406)
IMAGENET_STD = (0.229, 0.224, 0.225)
LOSS_LAYERS = (3, 8, 17, 26, 35)   # all ReLU layers in vgg19.features

_MAX_LANE_TILE = 32768   # per-step lane width cap (multiple of 128)
_MIN_LANE_TILE = 128


def _pad_up(x, m):
    return ((x + m - 1) // m) * m


def _sublane_pack(itemsize):
    # rows per vreg: 8 for 32-bit, 16 for 16-bit, 32 for 8-bit.
    return max(8, 8 * (4 // max(1, itemsize)))


def _vmem_capacity_bytes():
    try:
        return int(pltpu.get_tpu_info().vmem_capacity_bytes)
    except Exception:
        return 64 * 1024 * 1024   # conservative (v7x-sized) fallback


def _num_tensorcores():
    # Only dual-TensorCore chips benefit from the leading "parallel" axis.
    try:
        kind = jax.devices()[0].device_kind.lower()
    except Exception:
        return 1
    return 2 if any(tag in kind for tag in ("v4", "v5p", "v7")) else 1


def _row_fold_factor(rows, cols, pack):
    """Smallest k with cols % k == 0 and (rows*k) % pack == 0 (keep cols/k big)."""
    if rows % pack == 0:
        return 1
    for k in range(2, 65):
        if cols % k == 0 and (rows * k) % pack == 0 and (cols // k) >= 256:
            return k
    return 1


def _pick_lane_tile(rows, cols, in_itemsizes, budget_bytes):
    # Bytes per lane column of one grid step:
    #   each input: 2 pipeline buffers x (rows padded to its sublane pack)
    #   plus the single-buffered f32 accumulator scratch.
    per_lane = 0
    for isz in in_itemsizes:
        per_lane += 2 * _pad_up(rows, _sublane_pack(isz)) * isz
    per_lane += _pad_up(rows, 8) * 4
    max_lanes = max(_MIN_LANE_TILE, budget_bytes // per_lane)
    if cols <= max_lanes and cols <= _MAX_LANE_TILE:
        return cols                       # single full-width tile (full-dim block is legal)
    lt = min((max_lanes // 128) * 128, _MAX_LANE_TILE)
    return max(lt, _MIN_LANE_TILE)


def _perceptual_loss_kernel(pred_ref, targ_ref, bias_ref, scale_ref, out_ref,
                            acc_ref, *, lane_tile, total_cols, num_tiles,
                            tiles_per_core, mask_needed):
    j = pl.program_id(1)                  # reduction ("arbitrary") axis

    @pl.when(j == 0)
    def _():
        acc_ref[...] = jnp.zeros_like(acc_ref)

    p = pred_ref[...].astype(jnp.float32)          # (rows, lane_tile)
    t = targ_ref[...].astype(jnp.float32)
    b = bias_ref[...]                              # (rows, 1) = (0.5 - mean)/0.5

    # |relu(p*s + b0) - relu(t*s + b0)| == s * |relu(p + b) - relu(t + b)|
    # with b = b0/s; the per-row scale s is applied once at finalize.
    d = jnp.abs(jnp.maximum(p + b, 0.0) - jnp.maximum(t + b, 0.0))

    if mask_needed:
        g = pl.program_id(0) * tiles_per_core + j  # unclamped global tile index
        is_edge = g >= num_tiles - 1               # partial last tile / phantom tiles

        @pl.when(is_edge)
        def _():
            lane_ids = g * lane_tile + lax.broadcasted_iota(jnp.int32, d.shape, 1)
            acc_ref[...] += jnp.where(lane_ids < total_cols, d, 0.0)

        @pl.when(jnp.logical_not(is_edge))
        def _():
            acc_ref[...] += d
    else:
        acc_ref[...] += d

    @pl.when(j == tiles_per_core - 1)
    def _():
        # In-kernel finalize: one XLU lane reduce per core, per-row scale,
        # tiny (rows, 1) output block.
        out_ref[...] = jnp.sum(acc_ref[...], axis=1, keepdims=True) * scale_ref[...]


def perceptual_loss(pred, target):
    """Pallas implementation of PerceptualLoss.forward(pred, target)."""
    assert pred.shape == target.shape
    n, c, h, w = pred.shape
    assert c == 3, "mean/std buffers are 3-channel (RGB)"

    base_rows, base_cols = n * c, h * w
    count = base_rows * base_cols

    # Fold a spatial factor into rows when N*C is not sublane-dense so that the
    # VMEM accounting and vreg utilization are honest.
    pack = max(_sublane_pack(pred.dtype.itemsize), _sublane_pack(target.dtype.itemsize))
    k = _row_fold_factor(base_rows, base_cols, pack)
    rows, cols = base_rows * k, base_cols // k

    # Contiguous-NCHW reshape is a free view; no pad / cast in the wrapper.
    p2 = pred.reshape(rows, cols)
    t2 = target.reshape(rows, cols)

    mean = jnp.asarray(IMAGENET_MEAN, jnp.float32)
    std = jnp.asarray(IMAGENET_STD, jnp.float32)
    # Folded row r' has channel (r' // k) % 3.
    bias_rows = jnp.repeat(jnp.tile(1.0 - 2.0 * mean, n), k).reshape(rows, 1)
    scale_rows = jnp.repeat(jnp.tile(0.5 / std, n), k).reshape(rows, 1)

    # Generation-aware VMEM budget (64 MiB on v7x, 128 MiB on v5e/v6e).
    capacity = _vmem_capacity_bytes()
    vmem_limit = min(3 * capacity // 4, 96 * 1024 * 1024)
    block_budget = int(vmem_limit * 0.8)

    lane_tile = _pick_lane_tile(
        rows, cols, (p2.dtype.itemsize, t2.dtype.itemsize), block_budget)
    num_tiles = pl.cdiv(cols, lane_tile)

    num_cores = max(1, min(_num_tensorcores(), num_tiles))
    tiles_per_core = pl.cdiv(num_tiles, num_cores)
    total_scheduled = num_cores * tiles_per_core
    mask_needed = (total_scheduled * lane_tile) != cols

    if total_scheduled == num_tiles:
        def in_map(p, j):
            return (0, p * tiles_per_core + j)
    else:
        # Phantom tiles (odd split) re-read the last real block; fully masked.
        def in_map(p, j):
            return (0, jnp.minimum(p * tiles_per_core + j, num_tiles - 1))

    kernel = functools.partial(
        _perceptual_loss_kernel,
        lane_tile=lane_tile, total_cols=cols, num_tiles=num_tiles,
        tiles_per_core=tiles_per_core, mask_needed=mask_needed)

    cost = pl.CostEstimate(
        flops=7 * rows * cols,
        transcendentals=0,
        bytes_accessed=rows * cols * (p2.dtype.itemsize + t2.dtype.itemsize)
        + 4 * num_cores * rows)

    per_row = pl.pallas_call(
        kernel,
        out_shape=jax.ShapeDtypeStruct((num_cores, rows, 1), jnp.float32),
        grid_spec=pltpu.PrefetchScalarGridSpec(
            num_scalar_prefetch=0,
            grid=(num_cores, tiles_per_core),
            in_specs=[
                pl.BlockSpec((rows, lane_tile), in_map),
                pl.BlockSpec((rows, lane_tile), in_map),
                pl.BlockSpec((rows, 1), lambda p, j: (0, 0)),   # bias, resident
                pl.BlockSpec((rows, 1), lambda p, j: (0, 0)),   # scale, resident
            ],
            out_specs=pl.BlockSpec((None, rows, 1), lambda p, j: (p, 0, 0)),
            scratch_shapes=[pltpu.VMEM((rows, lane_tile), jnp.float32)],
        ),
        compiler_params=pltpu.CompilerParams(
            dimension_semantics=("parallel", "arbitrary"),
            vmem_limit_bytes=vmem_limit),
        cost_estimate=cost,
    )(p2, t2, bias_rows, scale_rows)

    # torch.nn.functional.l1_loss defaults to 'mean'; 5 identical ReLU layers.
    return jnp.float32(len(LOSS_LAYERS)) * jnp.sum(per_row) / jnp.float32(count)


def _reference_loss(pred, target):
    mean = jnp.asarray(IMAGENET_MEAN, jnp.float32).reshape(1, 3, 1, 1)
    std = jnp.asarray(IMAGENET_STD, jnp.float32).reshape(1, 3, 1, 1)

    def feat(x):
        x = (x.astype(jnp.float32) + 1.0) / 2.0
        x = (x - mean) / std
        return jnp.maximum(x, 0.0)

    fp, ft = feat(pred), feat(target)
    return jnp.float32(len(LOSS_LAYERS)) * jnp.mean(jnp.abs(fp - ft))


if __name__ == "__main__":
    key = jax.random.PRNGKey(0)
    k1, k2 = jax.random.split(key)
    # images in [-1, 1], NCHW, small shapes
    pred = jax.random.uniform(k1, (2, 3, 16, 16), jnp.float32, -1.0, 1.0)
    target = jax.random.uniform(k2, (2, 3, 16, 16), jnp.float32, -1.0, 1.0)

    loss = jax.block_until_ready(perceptual_loss(pred, target))
    ref = jax.block_until_ready(_reference_loss(pred, target))

    assert jnp.allclose(loss, ref, rtol=1e-4, atol=1e-5), (loss, ref)
    print("KERNEL_OK")
</pallas_src>

<mosaic_0001>
module attributes {stable_mosaic.version = 11 : i64} {
  func.func @_perceptual_loss_kernel(%arg0: i32, %arg1: i32, %arg2: memref<6x256xf32, #tpu.memory_space<vmem>>, %arg3: memref<6x256xf32, #tpu.memory_space<vmem>>, %arg4: memref<6x1xf32, #tpu.memory_space<vmem>>, %arg5: memref<6x1xf32, #tpu.memory_space<vmem>>, %arg6: memref<1x6x1xf32, #tpu.memory_space<vmem>>, %arg7: memref<6x256xf32, #tpu.memory_space<vmem>>) attributes {dimension_semantics = [#tpu.dimension_semantics<parallel>, #tpu.dimension_semantics<arbitrary>], iteration_bounds = array<i64: 1, 1>, scalar_prefetch = 0 : i64, scratch_operands = 1 : i64, tpu.core_type = #tpu.core_type<tc>, window_params = [{transform_indices = @transform_0, window_bounds = array<i64: 6, 256>}, {transform_indices = @transform_1, window_bounds = array<i64: 6, 256>}, {pipeline_mode = #tpu.pipeline_mode<synchronous>, transform_indices = @transform_2, window_bounds = array<i64: 6, 1>}, {pipeline_mode = #tpu.pipeline_mode<synchronous>, transform_indices = @transform_3, window_bounds = array<i64: 6, 1>}, {transform_indices = @transform_4, window_bounds = array<i64: 1, 6, 1>}]} {
    %c0_i32 = arith.constant 0 : i32
    %0 = arith.cmpi eq, %arg1, %c0_i32 : i32
    %1 = arith.extui %0 : i1 to i32
    %c0_i32_0 = arith.constant 0 : i32
    %2 = arith.cmpi ne, %1, %c0_i32_0 : i32
    scf.if %2 {
      %cst_13 = arith.constant 0.000000e+00 : f32
      %22 = vector.broadcast %cst_13 : f32 to vector<6x256xf32>
      %c0_14 = arith.constant 0 : index
      %c0_15 = arith.constant 0 : index
      %23 = vector.load %arg7[%c0_14, %c0_15] : memref<6x256xf32, #tpu.memory_space<vmem>>, vector<6x256xf32>
      tpu.vector_store %arg7[%c0_14, %c0_15], %22 {strides = array<i32>} : memref<6x256xf32, #tpu.memory_space<vmem>>, vector<6x256xf32>,
    } else {
    }
    %c0 = arith.constant 0 : index
    %c0_1 = arith.constant 0 : index
    %3 = vector.load %arg2[%c0, %c0_1] : memref<6x256xf32, #tpu.memory_space<vmem>>, vector<6x256xf32>
    %c0_2 = arith.constant 0 : index
    %c0_3 = arith.constant 0 : index
    %4 = vector.load %arg3[%c0_2, %c0_3] : memref<6x256xf32, #tpu.memory_space<vmem>>, vector<6x256xf32>
    %c0_4 = arith.constant 0 : index
    %c0_5 = arith.constant 0 : index
    %5 = vector.load %arg4[%c0_4, %c0_5] : memref<6x1xf32, #tpu.memory_space<vmem>>, vector<6x1xf32>
    %6 = vector.broadcast %5 : vector<6x1xf32> to vector<6x256xf32>
    %7 = arith.addf %3, %6 : vector<6x256xf32>
    %cst = arith.constant 0.000000e+00 : f32
    %8 = vector.broadcast %cst : f32 to vector<6x256xf32>
    %9 = arith.maximumf %7, %8 : vector<6x256xf32>
    %10 = vector.broadcast %5 : vector<6x1xf32> to vector<6x256xf32>
    %11 = arith.addf %4, %10 : vector<6x256xf32>
    %cst_6 = arith.constant 0.000000e+00 : f32
    %12 = vector.broadcast %cst_6 : f32 to vector<6x256xf32>
    %13 = arith.maximumf %11, %12 : vector<6x256xf32>
    %14 = arith.subf %9, %13 : vector<6x256xf32>
    %15 = math.absf %14 : vector<6x256xf32>
    %c0_7 = arith.constant 0 : index
    %c0_8 = arith.constant 0 : index
    %16 = vector.load %arg7[%c0_7, %c0_8] : memref<6x256xf32, #tpu.memory_space<vmem>>, vector<6x256xf32>
    %17 = arith.addf %16, %15 : vector<6x256xf32>
    %c0_9 = arith.constant 0 : index
    %c0_10 = arith.constant 0 : index
    %18 = vector.load %arg7[%c0_9, %c0_10] : memref<6x256xf32, #tpu.memory_space<vmem>>, vector<6x256xf32>
    tpu.vector_store %arg7[%c0_9, %c0_10], %17 {strides = array<i32>} : memref<6x256xf32, #tpu.memory_space<vmem>>, vector<6x256xf32>,
    %c0_i32_11 = arith.constant 0 : i32
    %19 = arith.cmpi eq, %arg1, %c0_i32_11 : i32
    %20 = arith.extui %19 : i1 to i32
    %c0_i32_12 = arith.constant 0 : i32
    %21 = arith.cmpi ne, %20, %c0_i32_12 : i32
    scf.if %21 {
      %c0_13 = arith.constant 0 : index
      %c0_14 = arith.constant 0 : index
      %22 = vector.load %arg7[%c0_13, %c0_14] : memref<6x256xf32, #tpu.memory_space<vmem>>, vector<6x256xf32>
      %cst_15 = arith.constant dense<0.000000e+00> : vector<6xf32>
      %23 = vector.multi_reduction <add>, %22, %cst_15 [1] : vector<6x256xf32> to vector<6xf32>
      %24 = vector.shape_cast %23 : vector<6xf32> to vector<6x1xf32>
      %c0_16 = arith.constant 0 : index
      %c0_17 = arith.constant 0 : index
      %25 = vector.load %arg5[%c0_16, %c0_17] : memref<6x1xf32, #tpu.memory_space<vmem>>, vector<6x1xf32>
      %26 = arith.mulf %24, %25 : vector<6x1xf32>
      %c0_18 = arith.constant 0 : index
      %c0_19 = arith.constant 0 : index
      %c0_20 = arith.constant 0 : index
      %27 = vector.load %arg6[%c0_18, %c0_19, %c0_20] : memref<1x6x1xf32, #tpu.memory_space<vmem>>, vector<1x6x1xf32>
      %28 = vector.shape_cast %27 : vector<1x6x1xf32> to vector<6x1xf32>
      %29 = vector.shape_cast %26 : vector<6x1xf32> to vector<1x6x1xf32>
      tpu.vector_store %arg6[%c0_18, %c0_19, %c0_20], %29 {strides = array<i32>} : memref<1x6x1xf32, #tpu.memory_space<vmem>>, vector<1x6x1xf32>,
    } else {
    }
    return
  }
  func.func @transform_0(%arg0: i32, %arg1: i32) -> (i32, i32) {
    %c1_i32 = arith.constant 1 : i32
    %0 = arith.muli %arg0, %c1_i32 : i32
    %1 = arith.addi %0, %arg1 : i32
    %c0_i32 = arith.constant 0 : i32
    %c0_i32_0 = arith.constant 0 : i32
    return %c0_i32, %1 : i32, i32
  }
  func.func @transform_1(%arg0: i32, %arg1: i32) -> (i32, i32) {
    %c1_i32 = arith.constant 1 : i32
    %0 = arith.muli %arg0, %c1_i32 : i32
    %1 = arith.addi %0, %arg1 : i32
    %c0_i32 = arith.constant 0 : i32
    %c0_i32_0 = arith.constant 0 : i32
    return %c0_i32, %1 : i32, i32
  }
  func.func @transform_2(%arg0: i32, %arg1: i32) -> (i32, i32) {
    %c0_i32 = arith.constant 0 : i32
    %c0_i32_0 = arith.constant 0 : i32
    %c0_i32_1 = arith.constant 0 : i32
    return %c0_i32, %c0_i32_0 : i32, i32
  }
  func.func @transform_3(%arg0: i32, %arg1: i32) -> (i32, i32) {
    %c0_i32 = arith.constant 0 : i32
    %c0_i32_0 = arith.constant 0 : i32
    %c0_i32_1 = arith.constant 0 : i32
    return %c0_i32, %c0_i32_0 : i32, i32
  }
  func.func @transform_4(%arg0: i32, %arg1: i32) -> (i32, i32, i32) {
    %c0_i32 = arith.constant 0 : i32
    %c0_i32_0 = arith.constant 0 : i32
    %c0_i32_1 = arith.constant 0 : i32
    return %arg0, %c0_i32, %c0_i32_0 : i32, i32, i32
  }
}

</mosaic_0001>

<llo_original>
// kernel: tpu_custom_call.1
$region0: #{tpu_custom_call.1}
  #allocation0 [shape = 'u32[]', space=smem, size = 0x4, offset = 0x4, fixed_abs, tag = 'smem constant byte address 0x4 - core index']
  #allocation1 [shape = 'u32[144,128]{1,0:T(1,128)}', space=vmem, size = 0x12000, scoped, tag = 'internal scratch']
  #allocation2 [shape = 'f32[6,256]{1,0:T(8,128)}', space=vmem, size = 0x2000, scoped, tag = 'scratch operand']
  %s0 = inlined_call_operand.vmem [shape: f32[6,256], index: 0, kind: input, shape index: {}]
  %s1 = inlined_call_operand.hbm [shape: f32[6,256], index: 1, kind: input, shape index: {}]
  %s2 = inlined_call_operand.vmem [shape: f32[6,1], index: 2, kind: input, shape index: {}]
  %s3 = inlined_call_operand.vmem [shape: f32[6,1], index: 3, kind: input, shape index: {}]
  %s4 = inlined_call_operand.vmem [shape: f32[1,6,1], index: 4, kind: output, shape index: {}]
  %s5 = sld [smem:[#allocation0]]
  $region38: #{tpu_custom_call.1} parent=0
    _
  %s7 = ssub.s32 1, %s5
  %s8 = scalar_select 0, %s7, %s5
  $region1: #{tpu_custom_call.1} parent=0
    #allocation3 [shape = 'u8[8192]{0}', space=vmem, size = 0x2000, scoped, tag = 'input window, operand 1, single buffered']
    #allocation4 [shape = 's32[1]{0}', space=sflag, size = 0x4, scoped, tag = 'scoped memory for tpu_custom_call.1']
    %9 = vsyncpa [#allocation4], 0
    // Predicated region
    $region2: #{tpu_custom_call.1} parent=1 // pred_check
      _
    $region3: #{tpu_custom_call.1} parent=1 // pred_check_branch
      %11 = sbr.rel (0) target = $region5
    $region4: #{tpu_custom_call.1} parent=1 // pred_region
      %s12 = sadd.s32 0, 0
      %s13 = smul.u32 2, %s12
      %p14 = scmp.lt.s32.totalorder %s13, 1
      %s15 = scalar_select %p14, %s13, 1
      %s16 = smul.addr %s15, 8
      %s17 = scalar_lea.vmem %s0, %s16
      %s18 = sadd.s32 0, 0
      %s19 = smul.u32 2, %s18
    $region5: #{tpu_custom_call.1} parent=1 // pred_fallthru
      _
    // Predicated region
    $region6: #{tpu_custom_call.1} parent=1 // pred_check
      _
    $region7: #{tpu_custom_call.1} parent=1 // pred_check_branch
      %21 = sbr.rel (0) target = $region9
    $region8: #{tpu_custom_call.1} parent=1 // pred_region
      %s22 = sadd.s32 0, 0
      %s23 = smul.u32 2, %s22
      %s25 = ssub.s32 256, 256
      %26 = vsyncadd [#allocation4], %s25
      %s27 = smul.addr %s23, 128
      %s28 = scalar_lea.hbm %s1, %s27
      %s30 = sshll.u32 [#allocation3], 4
      %s31 = int_to_ptr.vmem [resolvable:$true] %s30
      %33 = dma.hbm_to_vmem [thread:$0]  %s28, 256, %s31, [#allocation4]
    $region9: #{tpu_custom_call.1} parent=1 // pred_fallthru
      _
    // Predicated region
    $region10: #{tpu_custom_call.1} parent=1 // pred_check
      _
    $region11: #{tpu_custom_call.1} parent=1 // pred_check_branch
      %35 = sbr.rel (0) target = $region13
    $region12: #{tpu_custom_call.1} parent=1 // pred_region
      _
    $region13: #{tpu_custom_call.1} parent=1 // pred_fallthru
      _
    // Predicated region
    $region14: #{tpu_custom_call.1} parent=1 // pred_check
      _
    $region15: #{tpu_custom_call.1} parent=1 // pred_check_branch
      %37 = sbr.rel (0) target = $region17
    $region16: #{tpu_custom_call.1} parent=1 // pred_region
      _
    $region17: #{tpu_custom_call.1} parent=1 // pred_fallthru
      _
    // Predicated region
    $region18: #{tpu_custom_call.1} parent=1 // pred_check
      _
    $region19: #{tpu_custom_call.1} parent=1 // pred_check_branch
      %39 = sbr.rel (0) target = $region21
    $region20: #{tpu_custom_call.1} parent=1 // pred_region
      %40 = dma.done [#allocation4], 256
    $region21: #{tpu_custom_call.1} parent=1 // pred_fallthru
      _
    %s41 = sadd.s32 0, 0
    %s42 = smul.u32 2, %s41
    %p43 = scmp.lt.s32.totalorder %s42, 1
    %s44 = scalar_select %p43, %s42, 1
    %s45 = smul.addr %s44, 8
    %s46 = scalar_lea.vmem %s0, %s45
    %s47 = sadd.s32 0, 0
    %s48 = smul.u32 2, %s47
    %p49 = scmp.lt.s32.totalorder %s48, 1
    %s50 = scalar_select %p49, %s48, 1
    %s51 = smul.addr %s50, 8
    %s52 = scalar_lea.vmem %s0, %s51
    %s53 = sadd.s32 0, 0
    %s54 = smul.u32 2, %s53
    %s55 = sadd.s32 0, 0
    %s56 = smul.u32 2, %s55
    %p57 = scmp.eq.s32.totalorder 0, 0
    // Predicated region
    $region22: #{tpu_custom_call.1} parent=1 // pred_check
      %p58 = pneg %p57
    $region23: #{tpu_custom_call.1} parent=1 // pred_check_branch
      %60 = sbr.rel (%p58) target = $region25
    $region24: #{tpu_custom_call.1} parent=1 // pred_region
      %61 = vst [vmem:[#allocation2] sm:$0x3f] 0.0
      %62 = vst [vmem:[#allocation2 + $0x8] sm:$0x3f] 0.0
    $region25: #{tpu_custom_call.1} parent=1 // pred_fallthru
      _
    %v63 = vld [vmem:[%s52] sm:$0x3f]
    %v64 = vld [vmem:[%s52 + $0x8] sm:$0x3f]
    %v65 = vld [vmem:[#allocation3] sm:$0x3f]
    %v66 = vld [vmem:[#allocation3 + $0x8] sm:$0x3f]
    %v67 = vld [vmem:[%s2] sm:$0x3f]
    %69 = vset.pattern.permute.xlu0 0
    %70 = vperm.xlu0 %69, %v67
    %v71 = vpop.permute.xlu0 %70
    %v73 = vadd.f32 %v63, %v71
    %v74 = vadd.f32 %v64, %v71
    %v75 = vmax.f32 %v73, 0.0
    %v76 = vmax.f32 %v74, 0.0
    %v77 = vadd.f32 %v65, %v71
    %v78 = vadd.f32 %v66, %v71
    %v79 = vmax.f32 %v77, 0.0
    %v80 = vmax.f32 %v78, 0.0
    %v81 = vsub.f32 %v75, %v79
    %v82 = vsub.f32 %v76, %v80
    %v83 = vand.u32 2147483647, %v81
    %v84 = vand.u32 2147483647, %v82
    %v85 = vld [vmem:[#allocation2] sm:$0x3f]
    %v86 = vld [vmem:[#allocation2 + $0x8] sm:$0x3f]
    %v87 = vadd.f32 %v85, %v83
    %v88 = vadd.f32 %v86, %v84
    %89 = vst [vmem:[#allocation2] sm:$0x3f] %v87
    %90 = vst [vmem:[#allocation2 + $0x8] sm:$0x3f] %v88
    // Predicated region
    $region26: #{tpu_custom_call.1} parent=1 // pred_check
      %p91 = pneg %p57
    $region27: #{tpu_custom_call.1} parent=1 // pred_check_branch
      %93 = sbr.rel (%p91) target = $region29
    $region28: #{tpu_custom_call.1} parent=1 // pred_region
      %v94 = vld [vmem:[#allocation2] sm:$0x3f]
      %v95 = vld [vmem:[#allocation2 + $0x8] sm:$0x3f]
      %vm96 = vcmask 1045504
      %v97 = vsel %vm96, %v94, 0.0
      %v98 = vsel %vm96, %v95, 0.0
      %v99 = vadd.f32 %v97, %v98
      %100 = vadd.xlane.f32.xlu0 %v99
      %v101 = vpop.xlane.xlu0 %100
      %v102 = vld [vmem:[%s3] sm:$0x3f]
      %v103 = vmul.f32 %v101, %v102
      %vm104 = vcmask 5120
      %105 = vst.msk [vmem:[%s4] sm:$0x3f] %vm104, %v103
    $region29: #{tpu_custom_call.1} parent=1 // pred_fallthru
      _
    // Predicated region
    $region30: #{tpu_custom_call.1} parent=1 // pred_check
      _
    $region31: #{tpu_custom_call.1} parent=1 // pred_check_branch
      %107 = sbr.rel (0) target = $region33
    $region32: #{tpu_custom_call.1} parent=1 // pred_region
      _
    $region33: #{tpu_custom_call.1} parent=1 // pred_fallthru
      _
    // Predicated region
    $region34: #{tpu_custom_call.1} parent=1 // pred_check
      _
    $region35: #{tpu_custom_call.1} parent=1 // pred_check_branch
      %109 = sbr.rel (0) target = $region37
    $region36: #{tpu_custom_call.1} parent=1 // pred_region
      _
    $region37: #{tpu_custom_call.1} parent=1 // pred_fallthru
      _
    %110 = vsyncpa [#allocation4], 1

</llo_original>
